<compile_context>
chip_gen: v6e
topology: v6e:2x2x1
jax: 0.10.0
libtpu: 0.0.40
codegen_flags: <defaults>
</compile_context>

<pallas_src>
import functools

import jax
import jax.numpy as jnp
from jax.experimental import pallas as pl
from jax.experimental.pallas import tpu as pltpu


def _simam_kernel(x_ref, xat_ref, xinv_ref, at_ref, *, e_lambda, inv_n, inv_hw):
    # x_ref: (T, H*W) — T independent (batch, channel) rows, lane-dense last dim.
    x = x_ref[...].astype(jnp.float32)

    # Two-pass per-row statistics (matches PyTorch structure; no cancellation).
    mu = jnp.sum(x, axis=-1, keepdims=True) * inv_hw           # (T, 1)
    xm = x - mu
    d = xm * xm
    sum_d = jnp.sum(d, axis=-1, keepdims=True)                 # (T, 1)

    # Per-row scalar: exact divide on a (T, 1) tensor is cheap.
    inv_denom = 1.0 / (4.0 * (sum_d * inv_n + e_lambda))

    y = d * inv_denom + 0.5
    at = jax.nn.sigmoid(y)
    xat = x * at

    xat_ref[...] = xat.astype(xat_ref.dtype)
    xinv_ref[...] = (x - xat).astype(xinv_ref.dtype)           # x*(1-at) == x - x*at
    at_ref[...] = at.astype(at_ref.dtype)


def simam(x, e_lambda=1e-4):
    """x: (B, C, H, W). Returns (x*at, x*(1-at), at), each (B, C, H, W)."""
    b, c, h, w = x.shape
    hw = h * w
    rows = b * c
    n = float(hw - 1)
    # hw == 1 gives n == 0 -> inf propagates, same failure mode as the PyTorch module.
    inv_n = (1.0 / n) if n > 0.0 else float("inf")
    inv_hw = 1.0 / float(hw)

    xf = x.reshape(rows, hw)  # contiguous reshape: no copy

    itemsize = jnp.dtype(x.dtype).itemsize
    sublane = max(8, 32 // itemsize)  # f32: 8, bf16: 16, int8/fp8: 32

    # --- choose row-tile T (multiple of the sublane tile, block <= ~2 MiB) ---
    target_block_bytes = 2 << 20
    t_cap = max(sublane,
                (target_block_bytes // max(1, hw * itemsize)) // sublane * sublane)

    # Prefer >= 8 grid steps when there is enough work: >= 2 pipelined steps per
    # TensorCore on v7x's 2-core megacore keeps input DMA overlapped with the
    # 3x output writeback.
    min_steps = 8
    t_for_steps = -(-pl.cdiv(rows, min_steps) // sublane) * sublane
    t = max(sublane, min(t_cap, t_for_steps))

    # Ragged last block handled by Pallas: no host-side pad of xf, no output slice.
    grid = pl.cdiv(rows, t)

    kernel = functools.partial(
        _simam_kernel, e_lambda=float(e_lambda), inv_n=inv_n, inv_hw=inv_hw)

    block = pl.BlockSpec((t, hw), lambda i: (i, 0))
    out_shape = jax.ShapeDtypeStruct((rows, hw), x.dtype)

    # Memory-bound cost: 1 read + 3 writes of the full tensor.
    cost = pl.CostEstimate(
        flops=10 * rows * hw,
        transcendentals=rows * hw,
        bytes_accessed=4 * rows * hw * itemsize,
    )

    xat, xinv, at = pl.pallas_call(
        kernel,
        out_shape=(out_shape, out_shape, out_shape),
        grid_spec=pltpu.PrefetchScalarGridSpec(
            num_scalar_prefetch=0,
            grid=(grid,),
            in_specs=[block],
            out_specs=[block, block, block],
        ),
        compiler_params=pltpu.CompilerParams(
            dimension_semantics=("parallel",),
            # 2x(1 in + 3 out) x 2 MiB = 16 MiB buffers + ~10 MiB f32 intermediates;
            # 48 MiB leaves headroom and fits v7x's 64 MiB physical VMEM.
            vmem_limit_bytes=48 * 1024 * 1024,
        ),
        cost_estimate=cost,
    )(xf)

    def unflatten(a):
        return a.reshape(b, c, h, w)

    return unflatten(xat), unflatten(xinv), unflatten(at)


def _simam_ref(x, e_lambda=1e-4):
    b, c, h, w = x.shape
    n = w * h - 1
    mu = jnp.mean(x, axis=(2, 3), keepdims=True)
    d = (x - mu) ** 2
    y = d / (4.0 * (jnp.sum(d, axis=(2, 3), keepdims=True) / n + e_lambda)) + 0.5
    at = jax.nn.sigmoid(y)
    return x * at, x * (1.0 - at), at


if __name__ == "__main__":
    key = jax.random.PRNGKey(0)
    x = jax.random.normal(key, (2, 4, 16, 16), dtype=jnp.float32)

    out = simam(x, e_lambda=1e-4)
    out = jax.block_until_ready(out)

    ref = _simam_ref(x, e_lambda=1e-4)
    for o, r in zip(out, ref):
        assert o.shape == r.shape and o.dtype == r.dtype
        assert jnp.max(jnp.abs(o - r)) < 2e-5

    print("KERNEL_OK")
</pallas_src>

<mosaic_0001>
module attributes {stable_mosaic.version = 11 : i64} {
  func.func @_simam_kernel(%arg0: i32, %arg1: memref<8x256xf32, #tpu.memory_space<vmem>>, %arg2: memref<8x256xf32, #tpu.memory_space<vmem>>, %arg3: memref<8x256xf32, #tpu.memory_space<vmem>>, %arg4: memref<8x256xf32, #tpu.memory_space<vmem>>) attributes {dimension_semantics = [#tpu.dimension_semantics<parallel>], iteration_bounds = array<i64: 1>, scalar_prefetch = 0 : i64, scratch_operands = 0 : i64, tpu.core_type = #tpu.core_type<tc>, window_params = [{transform_indices = @transform_0, window_bounds = array<i64: 8, 256>}, {transform_indices = @transform_1, window_bounds = array<i64: 8, 256>}, {transform_indices = @transform_2, window_bounds = array<i64: 8, 256>}, {transform_indices = @transform_3, window_bounds = array<i64: 8, 256>}]} {
    %c0 = arith.constant 0 : index
    %c0_0 = arith.constant 0 : index
    %0 = vector.load %arg1[%c0, %c0_0] : memref<8x256xf32, #tpu.memory_space<vmem>>, vector<8x256xf32>
    %cst = arith.constant dense<0.000000e+00> : vector<8xf32>
    %1 = vector.multi_reduction <add>, %0, %cst [1] : vector<8x256xf32> to vector<8xf32>
    %2 = vector.shape_cast %1 : vector<8xf32> to vector<8x1xf32>
    %cst_1 = arith.constant 3.906250e-03 : f32
    %3 = vector.broadcast %cst_1 : f32 to vector<8x1xf32>
    %4 = arith.mulf %2, %3 : vector<8x1xf32>
    %5 = vector.broadcast %4 : vector<8x1xf32> to vector<8x256xf32>
    %6 = arith.subf %0, %5 : vector<8x256xf32>
    %7 = arith.mulf %6, %6 : vector<8x256xf32>
    %cst_2 = arith.constant dense<0.000000e+00> : vector<8xf32>
    %8 = vector.multi_reduction <add>, %7, %cst_2 [1] : vector<8x256xf32> to vector<8xf32>
    %9 = vector.shape_cast %8 : vector<8xf32> to vector<8x1xf32>
    %cst_3 = arith.constant 0.00392156886 : f32
    %10 = vector.broadcast %cst_3 : f32 to vector<8x1xf32>
    %11 = arith.mulf %9, %10 : vector<8x1xf32>
    %cst_4 = arith.constant 9.99999974E-5 : f32
    %12 = vector.broadcast %cst_4 : f32 to vector<8x1xf32>
    %13 = arith.addf %11, %12 : vector<8x1xf32>
    %cst_5 = arith.constant 4.000000e+00 : f32
    %14 = vector.broadcast %cst_5 : f32 to vector<8x1xf32>
    %15 = arith.mulf %14, %13 : vector<8x1xf32>
    %cst_6 = arith.constant 1.000000e+00 : f32
    %16 = vector.broadcast %cst_6 : f32 to vector<8x1xf32>
    %17 = arith.divf %16, %15 : vector<8x1xf32>
    %18 = vector.broadcast %17 : vector<8x1xf32> to vector<8x256xf32>
    %19 = arith.mulf %7, %18 : vector<8x256xf32>
    %cst_7 = arith.constant 5.000000e-01 : f32
    %20 = vector.broadcast %cst_7 : f32 to vector<8x256xf32>
    %21 = arith.addf %19, %20 : vector<8x256xf32>
    %22 = arith.negf %21 : vector<8x256xf32>
    %23 = math.exp %22 : vector<8x256xf32>
    %cst_8 = arith.constant 1.000000e+00 : f32
    %24 = vector.broadcast %cst_8 : f32 to vector<8x256xf32>
    %25 = arith.addf %24, %23 : vector<8x256xf32>
    %26 = arith.divf %24, %25 : vector<8x256xf32>
    %27 = arith.mulf %0, %26 : vector<8x256xf32>
    %c0_9 = arith.constant 0 : index
    %c0_10 = arith.constant 0 : index
    %28 = vector.load %arg2[%c0_9, %c0_10] : memref<8x256xf32, #tpu.memory_space<vmem>>, vector<8x256xf32>
    tpu.vector_store %arg2[%c0_9, %c0_10], %27 {strides = array<i32>} : memref<8x256xf32, #tpu.memory_space<vmem>>, vector<8x256xf32>,
    %29 = arith.subf %0, %27 : vector<8x256xf32>
    %c0_11 = arith.constant 0 : index
    %c0_12 = arith.constant 0 : index
    %30 = vector.load %arg3[%c0_11, %c0_12] : memref<8x256xf32, #tpu.memory_space<vmem>>, vector<8x256xf32>
    tpu.vector_store %arg3[%c0_11, %c0_12], %29 {strides = array<i32>} : memref<8x256xf32, #tpu.memory_space<vmem>>, vector<8x256xf32>,
    %c0_13 = arith.constant 0 : index
    %c0_14 = arith.constant 0 : index
    %31 = vector.load %arg4[%c0_13, %c0_14] : memref<8x256xf32, #tpu.memory_space<vmem>>, vector<8x256xf32>
    tpu.vector_store %arg4[%c0_13, %c0_14], %26 {strides = array<i32>} : memref<8x256xf32, #tpu.memory_space<vmem>>, vector<8x256xf32>,
    return
  }
  func.func @transform_0(%arg0: i32) -> (i32, i32) {
    %c0_i32 = arith.constant 0 : i32
    %c0_i32_0 = arith.constant 0 : i32
    return %arg0, %c0_i32 : i32, i32
  }
  func.func @transform_1(%arg0: i32) -> (i32, i32) {
    %c0_i32 = arith.constant 0 : i32
    %c0_i32_0 = arith.constant 0 : i32
    return %arg0, %c0_i32 : i32, i32
  }
  func.func @transform_2(%arg0: i32) -> (i32, i32) {
    %c0_i32 = arith.constant 0 : i32
    %c0_i32_0 = arith.constant 0 : i32
    return %arg0, %c0_i32 : i32, i32
  }
  func.func @transform_3(%arg0: i32) -> (i32, i32) {
    %c0_i32 = arith.constant 0 : i32
    %c0_i32_0 = arith.constant 0 : i32
    return %arg0, %c0_i32 : i32, i32
  }
}

</mosaic_0001>

<llo_original>
// kernel: tpu_custom_call.1
$region0: #{tpu_custom_call.1}
  #allocation0 [shape = 'u32[]', space=smem, size = 0x4, offset = 0x4, fixed_abs, tag = 'smem constant byte address 0x4 - core index']
  #allocation1 [shape = 'u32[144,128]{1,0:T(1,128)}', space=vmem, size = 0x12000, scoped, tag = 'internal scratch']
  %s0 = inlined_call_operand.hbm [shape: f32[8,256], index: 0, kind: input, shape index: {}]
  %s1 = inlined_call_operand.hbm [shape: f32[8,256], index: 1, kind: output, shape index: {0}]
  %s2 = inlined_call_operand.hbm [shape: f32[8,256], index: 2, kind: output, shape index: {1}]
  %s3 = inlined_call_operand.hbm [shape: f32[8,256], index: 3, kind: output, shape index: {2}]
  %4 = xla_tuple %s1, %s2, %s3
  %s5 = sld [smem:[#allocation0]]
  $region34: #{tpu_custom_call.1} parent=0
    _
  %s7 = ssub.s32 1, %s5
  %s8 = scalar_select 0, %s7, %s5
  $region1: #{tpu_custom_call.1} parent=0
    #allocation2 [shape = 'u8[8192]{0}', space=vmem, size = 0x2000, scoped, tag = 'input window, operand 0, single buffered']
    #allocation3 [shape = 's32[1]{0}', space=sflag, size = 0x4, scoped, tag = 'scoped memory for tpu_custom_call.1']
    #allocation4 [shape = 's32[1]{0}', space=sflag, size = 0x4, scoped, tag = 'scoped memory for tpu_custom_call.1']
    #allocation5 [shape = 'u8[8192]{0}', space=vmem, size = 0x2000, scoped, tag = 'output window, operand 0, single buffered']
    #allocation6 [shape = 'u8[8192]{0}', space=vmem, size = 0x2000, scoped, tag = 'output window, operand 1, single buffered']
    #allocation7 [shape = 's32[1]{0}', space=sflag, size = 0x4, scoped, tag = 'scoped memory for tpu_custom_call.1']
    #allocation8 [shape = 'u8[8192]{0}', space=vmem, size = 0x2000, scoped, tag = 'output window, operand 2, single buffered']
    %9 = vsyncpa [#allocation3], 0
    %10 = vsyncpa [#allocation4], 0
    %11 = vsyncpa [#allocation7], 0
    // Predicated region
    $region2: #{tpu_custom_call.1} parent=1 // pred_check
      _
    $region3: #{tpu_custom_call.1} parent=1 // pred_check_branch
      %13 = sbr.rel (0) target = $region5
    $region4: #{tpu_custom_call.1} parent=1 // pred_region
      %s15 = ssub.s32 256, 256
      %16 = vsyncadd [#allocation3], %s15
      %s18 = sshll.u32 [#allocation2], 4
      %s19 = int_to_ptr.vmem [resolvable:$true] %s18
      %21 = dma.hbm_to_vmem [thread:$0]  %s0, 256, %s19, [#allocation3]
    $region5: #{tpu_custom_call.1} parent=1 // pred_fallthru
      _
    // Predicated region
    $region6: #{tpu_custom_call.1} parent=1 // pred_check
      _
    $region7: #{tpu_custom_call.1} parent=1 // pred_check_branch
      %23 = sbr.rel (0) target = $region9
    $region8: #{tpu_custom_call.1} parent=1 // pred_region
      %24 = dma.done [#allocation3], 256
    $region9: #{tpu_custom_call.1} parent=1 // pred_fallthru
      _
    %v25 = vld [vmem:[#allocation2] sm:$0xff]
    %v26 = vld [vmem:[#allocation2 + $0x8] sm:$0xff]
    %v27 = vadd.f32 %v25, %v26
    %28 = vadd.xlane.f32.xlu0 %v27
    %v29 = vpop.xlane.xlu0 %28
    %v30 = vmul.f32 %v29, 0.00390625
    %v31 = vsub.f32 %v25, %v30
    %v32 = vsub.f32 %v26, %v30
    %v33 = vmul.f32 %v31, %v31
    %v34 = vmul.f32 %v32, %v32
    %v35 = vadd.f32 %v33, %v34
    %36 = vadd.xlane.f32.xlu0 %v35
    %v37 = vpop.xlane.xlu0 %36
    %v38 = vmul.f32 %v37, 0.003921569
    %v39 = vadd.f32 %v38, 0.0001
    %v40 = vmul.f32 %v39, 4.0
    %v41 = vrcp.pop %v40
    %v42 = vmul.f32 1.0, %v41
    %v43 = vmul.f32 %v33, %v42
    %v44 = vmul.f32 %v34, %v42
    %v45 = vadd.f32 %v43, 0.5
    %v46 = vadd.f32 %v44, 0.5
    %v47 = vxor.u32 %v45, 2147483648
    %v48 = vxor.u32 %v46, 2147483648
    %v49 = vmul.f32 %v47, 1.442695
    %v50 = vpow.pop %v49
    %v51 = vmul.f32 %v48, 1.442695
    %v52 = vpow.pop %v51
    %v53 = vadd.f32 %v50, 1.0
    %v54 = vadd.f32 %v52, 1.0
    %v55 = vrcp.pop %v53
    %v56 = vmul.f32 1.0, %v55
    %v57 = vrcp.pop %v54
    %v58 = vmul.f32 1.0, %v57
    %v59 = vmul.f32 %v25, %v56
    %v60 = vmul.f32 %v26, %v58
    %61 = vst [vmem:[#allocation5] sm:$0xff] %v59
    %62 = vst [vmem:[#allocation5 + $0x8] sm:$0xff] %v60
    %v63 = vsub.f32 %v25, %v59
    %v64 = vsub.f32 %v26, %v60
    %65 = vst [vmem:[#allocation6] sm:$0xff] %v63
    %66 = vst [vmem:[#allocation6 + $0x8] sm:$0xff] %v64
    %67 = vst [vmem:[#allocation8] sm:$0xff] %v56
    %68 = vst [vmem:[#allocation8 + $0x8] sm:$0xff] %v58
    // Predicated region
    $region10: #{tpu_custom_call.1} parent=1 // pred_check
      _
    $region11: #{tpu_custom_call.1} parent=1 // pred_check_branch
      %70 = sbr.rel (0) target = $region13
    $region12: #{tpu_custom_call.1} parent=1 // pred_region
      %s72 = ssub.s32 256, 256
      %73 = vsyncadd [#allocation4], %s72
      %s75 = sshll.u32 [#allocation5], 4
      %s76 = int_to_ptr.vmem [resolvable:$true] %s75
      %78 = dma.vmem_to_hbm [thread:$0]  %s76, 256, %s1, [#allocation4]
    $region13: #{tpu_custom_call.1} parent=1 // pred_fallthru
      _
    // Predicated region
    $region14: #{tpu_custom_call.1} parent=1 // pred_check
      _
    $region15: #{tpu_custom_call.1} parent=1 // pred_check_branch
      %80 = sbr.rel (0) target = $region17
    $region16: #{tpu_custom_call.1} parent=1 // pred_region
      %s82 = ssub.s32 256, 256
      %83 = vsyncadd [#allocation7], %s82
      %s85 = sshll.u32 [#allocation6], 4
      %s86 = int_to_ptr.vmem [resolvable:$true] %s85
      %88 = dma.vmem_to_hbm [thread:$0]  %s86, 256, %s2, [#allocation7]
    $region17: #{tpu_custom_call.1} parent=1 // pred_fallthru
      _
    // Predicated region
    $region18: #{tpu_custom_call.1} parent=1 // pred_check
      _
    $region19: #{tpu_custom_call.1} parent=1 // pred_check_branch
      %90 = sbr.rel (0) target = $region21
    $region20: #{tpu_custom_call.1} parent=1 // pred_region
      %s92 = ssub.s32 256, 256
      %93 = vsyncadd [#allocation7], %s92
      %s95 = sshll.u32 [#allocation8], 4
      %s96 = int_to_ptr.vmem [resolvable:$true] %s95
      %98 = dma.vmem_to_hbm [thread:$0]  %s96, 256, %s3, [#allocation7]
    $region21: #{tpu_custom_call.1} parent=1 // pred_fallthru
      _
    // Predicated region
    $region22: #{tpu_custom_call.1} parent=1 // pred_check
      _
    $region23: #{tpu_custom_call.1} parent=1 // pred_check_branch
      %100 = sbr.rel (0) target = $region25
    $region24: #{tpu_custom_call.1} parent=1 // pred_region
      %101 = dma.done [#allocation4], 256
    $region25: #{tpu_custom_call.1} parent=1 // pred_fallthru
      _
    // Predicated region
    $region26: #{tpu_custom_call.1} parent=1 // pred_check
      _
    $region27: #{tpu_custom_call.1} parent=1 // pred_check_branch
      %103 = sbr.rel (0) target = $region29
    $region28: #{tpu_custom_call.1} parent=1 // pred_region
      %104 = dma.done [#allocation7], 256
    $region29: #{tpu_custom_call.1} parent=1 // pred_fallthru
      _
    // Predicated region
    $region30: #{tpu_custom_call.1} parent=1 // pred_check
      _
    $region31: #{tpu_custom_call.1} parent=1 // pred_check_branch
      %106 = sbr.rel (0) target = $region33
    $region32: #{tpu_custom_call.1} parent=1 // pred_region
      %107 = dma.done [#allocation7], 256
    $region33: #{tpu_custom_call.1} parent=1 // pred_fallthru
      _
    %108 = vsyncpa [#allocation3], 1
    %109 = vsyncpa [#allocation4], 1
    %110 = vsyncpa [#allocation7], 1

</llo_original>
